<compile_context>
chip_gen: v7x
topology: tpu7x:2x2x1
jax: 0.10.0
libtpu: 0.0.40
codegen_flags: <defaults>
</compile_context>

<pallas_src>
import functools

import jax
import jax.numpy as jnp
from jax.experimental import pallas as pl
from jax.experimental.pallas import tpu as pltpu


def _abs_loss_kernel(pred_ref, gt_ref, out_ref, *, epsilon):
    # Promote to f32 so low-precision inputs (bf16/fp8) don't swamp epsilon.
    d = pred_ref[...].astype(jnp.float32) - gt_ref[...].astype(jnp.float32)
    out_ref[...] = jnp.sqrt(d * d + epsilon).astype(out_ref.dtype)


def _abs_loss_2d(pred2d, gt2d, epsilon):
    """Run the Pallas kernel on a lane-dense (rows, cols) slab (cols % 128 == 0)."""
    rows, cols = pred2d.shape
    dtype = pred2d.dtype
    itemsize = jnp.dtype(dtype).itemsize
    total = rows * cols

    # ~4 MiB per operand per block -> 24 MiB total double-buffered VMEM.
    target_bytes = 4 << 20
    target_rows = max(8, (((target_bytes // itemsize) // cols) // 8) * 8)

    if rows <= 8:
        block_rows = rows                 # equals full dim -> always legal
    else:
        # Guarantee >= 2 grid steps (megacore sharding on v7x) and rely on a
        # partial last block instead of dropping to tiny divisor blocks.
        half_rows = (((-(-rows // 2)) + 7) // 8) * 8
        block_rows = min(target_rows, half_rows)

    grid = (pl.cdiv(rows, block_rows),)

    kernel = functools.partial(_abs_loss_kernel, epsilon=float(epsilon))

    return pl.pallas_call(
        kernel,
        out_shape=jax.ShapeDtypeStruct((rows, cols), dtype),
        grid=grid,
        in_specs=[
            pl.BlockSpec((block_rows, cols), lambda i: (i, 0)),  # pred tile
            pl.BlockSpec((block_rows, cols), lambda i: (i, 0)),  # gt tile
        ],
        out_specs=pl.BlockSpec((block_rows, cols), lambda i: (i, 0)),
        compiler_params=pltpu.CompilerParams(
            dimension_semantics=("parallel",),
            vmem_limit_bytes=48 << 20,
        ),
        cost_estimate=pl.CostEstimate(
            flops=3 * total,
            transcendentals=total,
            bytes_accessed=3 * total * itemsize,
        ),
    )(pred2d, gt2d)


def absolute_loss(pred, gt, epsilon=1e-6):
    assert pred.shape == gt.shape, "pred/gt shape mismatch"
    orig_shape = pred.shape
    total = pred.size

    # ---- lane-dense 2D slab layout (no-copy when total % 128 == 0) ----------
    cols = None
    for c in (8192, 4096, 2048, 1024, 512, 256, 128):
        if total % c == 0:
            cols = c
            break

    if cols is not None:
        out2d = _abs_loss_2d(pred.reshape(-1, cols), gt.reshape(-1, cols), epsilon)
        return out2d.reshape(orig_shape)

    # ---- rare odd-size fallback: kernel on the 128-aligned prefix, plain JAX
    # on the (<128-element) tail.  No full-array pad / extra HBM passes.
    main = (total // 128) * 128
    pred_f = pred.reshape(-1)
    gt_f = gt.reshape(-1)
    eps_f = jnp.float32(epsilon)

    tail_d = pred_f[main:].astype(jnp.float32) - gt_f[main:].astype(jnp.float32)
    tail = jnp.sqrt(tail_d * tail_d + eps_f).astype(pred.dtype)

    if main == 0:
        # Fewer than 128 elements total; plain jnp is the right tool here.
        return tail.reshape(orig_shape)

    head2d = _abs_loss_2d(pred_f[:main].reshape(-1, 128),
                          gt_f[:main].reshape(-1, 128), epsilon)
    return jnp.concatenate([head2d.reshape(-1), tail]).reshape(orig_shape)


if __name__ == "__main__":
    key = jax.random.PRNGKey(0)
    k1, k2 = jax.random.split(key)
    # NCHW inputs, small shapes
    pred = jax.random.normal(k1, (2, 4, 16, 16), dtype=jnp.float32)
    gt = jax.random.normal(k2, (2, 4, 16, 16), dtype=jnp.float32)

    out = absolute_loss(pred, gt, epsilon=1e-6)
    out = jax.block_until_ready(out)

    # sanity check vs. pure-JAX reference
    ref = jnp.sqrt((pred - gt) ** 2 + 1e-6)
    assert out.shape == pred.shape
    assert jnp.allclose(out, ref, atol=1e-6, rtol=1e-6)

    print("KERNEL_OK")
</pallas_src>

<mosaic_0001>
module attributes {stable_mosaic.version = 11 : i64} {
  func.func @_abs_loss_kernel(%arg0: i32, %arg1: memref<1x2048xf32, #tpu.memory_space<vmem>>, %arg2: memref<1x2048xf32, #tpu.memory_space<vmem>>, %arg3: memref<1x2048xf32, #tpu.memory_space<vmem>>) attributes {dimension_semantics = [#tpu.dimension_semantics<parallel>], iteration_bounds = array<i64: 1>, scalar_prefetch = 0 : i64, scratch_operands = 0 : i64, tpu.core_type = #tpu.core_type<tc>, window_params = [{transform_indices = @transform_0, window_bounds = array<i64: 1, 2048>}, {transform_indices = @transform_1, window_bounds = array<i64: 1, 2048>}, {transform_indices = @transform_2, window_bounds = array<i64: 1, 2048>}]} {
    %c0 = arith.constant 0 : index
    %c0_0 = arith.constant 0 : index
    %0 = vector.load %arg1[%c0, %c0_0] : memref<1x2048xf32, #tpu.memory_space<vmem>>, vector<1x2048xf32>
    %c0_1 = arith.constant 0 : index
    %c0_2 = arith.constant 0 : index
    %1 = vector.load %arg2[%c0_1, %c0_2] : memref<1x2048xf32, #tpu.memory_space<vmem>>, vector<1x2048xf32>
    %2 = arith.subf %0, %1 : vector<1x2048xf32>
    %3 = arith.mulf %2, %2 : vector<1x2048xf32>
    %cst = arith.constant 9.99999997E-7 : f32
    %4 = vector.broadcast %cst : f32 to vector<1x2048xf32>
    %5 = arith.addf %3, %4 : vector<1x2048xf32>
    %6 = math.sqrt %5 : vector<1x2048xf32>
    %c0_3 = arith.constant 0 : index
    %c0_4 = arith.constant 0 : index
    %7 = vector.load %arg3[%c0_3, %c0_4] : memref<1x2048xf32, #tpu.memory_space<vmem>>, vector<1x2048xf32>
    tpu.vector_store %arg3[%c0_3, %c0_4], %6 {strides = array<i32>} : memref<1x2048xf32, #tpu.memory_space<vmem>>, vector<1x2048xf32>,
    return
  }
  func.func @transform_0(%arg0: i32) -> (i32, i32) {
    %c0_i32 = arith.constant 0 : i32
    %c0_i32_0 = arith.constant 0 : i32
    return %arg0, %c0_i32 : i32, i32
  }
  func.func @transform_1(%arg0: i32) -> (i32, i32) {
    %c0_i32 = arith.constant 0 : i32
    %c0_i32_0 = arith.constant 0 : i32
    return %arg0, %c0_i32 : i32, i32
  }
  func.func @transform_2(%arg0: i32) -> (i32, i32) {
    %c0_i32 = arith.constant 0 : i32
    %c0_i32_0 = arith.constant 0 : i32
    return %arg0, %c0_i32 : i32, i32
  }
}

</mosaic_0001>

<llo_original>
// kernel: tpu_custom_call.1
$region0: #{tpu_custom_call.1}
  #allocation0 [shape = 'u32[]', space=smem, size = 0x4, offset = 0x4, fixed_abs, tag = 'smem constant byte address 0x4 - core index']
  #allocation1 [shape = 'u32[144,128]{1,0:T(1,128)}', space=vmem, size = 0x12000, scoped, tag = 'internal scratch']
  %s0 = inlined_call_operand.hbm [shape: f32[1,2048], index: 0, kind: input, shape index: {}]
  %s1 = inlined_call_operand.hbm [shape: f32[1,2048], index: 1, kind: input, shape index: {}]
  %s2 = inlined_call_operand.hbm [shape: f32[1,2048], index: 2, kind: output, shape index: {}]
  %s3 = sld [smem:[#allocation0]]
  $region26: #{tpu_custom_call.1} parent=0
    _
  %s5 = ssub.s32 1, %s3
  %s6 = scalar_select 0, %s5, %s3
  $region1: #{tpu_custom_call.1} parent=0
    #allocation2 [shape = 'u8[8192]{0}', space=vmem, size = 0x2000, scoped, tag = 'input window, operand 0, single buffered']
    #allocation3 [shape = 's32[1]{0}', space=sflag, size = 0x4, scoped, tag = 'scoped memory for tpu_custom_call.1']
    #allocation4 [shape = 's32[1]{0}', space=sflag, size = 0x4, scoped, tag = 'scoped memory for tpu_custom_call.1']
    #allocation5 [shape = 'u8[8192]{0}', space=vmem, size = 0x2000, scoped, tag = 'input window, operand 1, single buffered']
    #allocation6 [shape = 's32[1]{0}', space=sflag, size = 0x4, scoped, tag = 'scoped memory for tpu_custom_call.1']
    #allocation7 [shape = 'u8[8192]{0}', space=vmem, size = 0x2000, scoped, tag = 'output window, operand 0, single buffered']
    %7 = vsyncpa [#allocation3], 0
    %8 = vsyncpa [#allocation6], 0
    %9 = vsyncpa [#allocation4], 0
    // Predicated region
    $region2: #{tpu_custom_call.1} parent=1 // pred_check
      _
    $region3: #{tpu_custom_call.1} parent=1 // pred_check_branch
      %11 = sbr.rel (0) target = $region5
    $region4: #{tpu_custom_call.1} parent=1 // pred_region
      %s13 = ssub.s32 256, 256
      %14 = vsyncadd [#allocation3], %s13
      %s16 = sshll.u32 [#allocation2], 4
      %s17 = int_to_ptr.vmem [resolvable:$true] %s16
      %19 = dma.hbm_to_vmem [thread:$0]  %s0, 256, %s17, [#allocation3]
    $region5: #{tpu_custom_call.1} parent=1 // pred_fallthru
      _
    // Predicated region
    $region6: #{tpu_custom_call.1} parent=1 // pred_check
      _
    $region7: #{tpu_custom_call.1} parent=1 // pred_check_branch
      %21 = sbr.rel (0) target = $region9
    $region8: #{tpu_custom_call.1} parent=1 // pred_region
      %s23 = ssub.s32 256, 256
      %24 = vsyncadd [#allocation6], %s23
      %s26 = sshll.u32 [#allocation5], 4
      %s27 = int_to_ptr.vmem [resolvable:$true] %s26
      %29 = dma.hbm_to_vmem [thread:$0]  %s1, 256, %s27, [#allocation6]
    $region9: #{tpu_custom_call.1} parent=1 // pred_fallthru
      _
    // Predicated region
    $region10: #{tpu_custom_call.1} parent=1 // pred_check
      _
    $region11: #{tpu_custom_call.1} parent=1 // pred_check_branch
      %31 = sbr.rel (0) target = $region13
    $region12: #{tpu_custom_call.1} parent=1 // pred_region
      %32 = dma.done [#allocation3], 256
    $region13: #{tpu_custom_call.1} parent=1 // pred_fallthru
      _
    // Predicated region
    $region14: #{tpu_custom_call.1} parent=1 // pred_check
      _
    $region15: #{tpu_custom_call.1} parent=1 // pred_check_branch
      %34 = sbr.rel (0) target = $region17
    $region16: #{tpu_custom_call.1} parent=1 // pred_region
      %35 = dma.done [#allocation6], 256
    $region17: #{tpu_custom_call.1} parent=1 // pred_fallthru
      _
    %v36 = vld [vmem:[#allocation2] sm:$0xff]
    %v37 = vld [vmem:[#allocation2 + $0x8] sm:$0xff]
    %v38 = vld [vmem:[#allocation5] sm:$0xff]
    %v39 = vld [vmem:[#allocation5 + $0x8] sm:$0xff]
    %v40 = vsub.f32 %v36, %v38
    %v41 = vsub.f32 %v37, %v39
    %v42 = vmul.f32 %v40, %v40
    %v43 = vmul.f32 %v41, %v41
    %v44 = vadd.f32 %v42, 1e-06
    %v45 = vadd.f32 %v43, 1e-06
    %v46 = vrsqrt.pop %v44
    %v47 = vmul.f32 %v44, %v46
    %vm48 = vcmp.eq.f32.partialorder %v44, inf
    %v49 = vsel %vm48, %v44, %v47
    %vm50 = vcmp.eq.f32.partialorder %v44, 0.0
    %v51 = vand.u32 %v44, 2147483648
    %v52 = vsel %vm50, %v51, %v49
    %v53 = vrsqrt.pop %v45
    %v54 = vmul.f32 %v45, %v53
    %vm55 = vcmp.eq.f32.partialorder %v45, inf
    %v56 = vsel %vm55, %v45, %v54
    %vm57 = vcmp.eq.f32.partialorder %v45, 0.0
    %v58 = vand.u32 %v45, 2147483648
    %v59 = vsel %vm57, %v58, %v56
    %60 = vst [vmem:[#allocation7] sm:$0xff] %v52
    %61 = vst [vmem:[#allocation7 + $0x8] sm:$0xff] %v59
    // Predicated region
    $region18: #{tpu_custom_call.1} parent=1 // pred_check
      _
    $region19: #{tpu_custom_call.1} parent=1 // pred_check_branch
      %63 = sbr.rel (0) target = $region21
    $region20: #{tpu_custom_call.1} parent=1 // pred_region
      %s65 = ssub.s32 256, 256
      %66 = vsyncadd [#allocation4], %s65
      %s68 = sshll.u32 [#allocation7], 4
      %s69 = int_to_ptr.vmem [resolvable:$true] %s68
      %71 = dma.vmem_to_hbm [thread:$0]  %s69, 256, %s2, [#allocation4]
    $region21: #{tpu_custom_call.1} parent=1 // pred_fallthru
      _
    // Predicated region
    $region22: #{tpu_custom_call.1} parent=1 // pred_check
      _
    $region23: #{tpu_custom_call.1} parent=1 // pred_check_branch
      %73 = sbr.rel (0) target = $region25
    $region24: #{tpu_custom_call.1} parent=1 // pred_region
      %74 = dma.done [#allocation4], 256
    $region25: #{tpu_custom_call.1} parent=1 // pred_fallthru
      _
    %75 = vsyncpa [#allocation3], 1
    %76 = vsyncpa [#allocation6], 1
    %77 = vsyncpa [#allocation4], 1

</llo_original>
